<compile_context>
chip_gen: v7x
topology: tpu7x:2x2x1
jax: 0.10.0
libtpu: 0.0.40
codegen_flags: <defaults>
</compile_context>

<pallas_src>
import jax
import jax.numpy as jnp
from jax.experimental import pallas as pl
from jax.experimental.pallas import tpu as pltpu

PACK = 16                      # batch rows packed per VMEM row (16 * 8 features = 128 lanes)
IN_F, H1, H2 = 8, 12, 8        # layer widths of the PyTorch module


def _round_up(n, m):
    return ((n + m - 1) // m) * m


def _mlp_kernel(x_ref, w1_ref, b1_ref, w2_ref, b2_ref, w3_ref, b3_ref, o_ref):
    """One batch tile of the packed MLP.

    x_ref : (tile_rows, 128) -- 16 batch rows per VMEM row, lane-dense.
    w*_ref: block-diagonal replicated weights (bf16), resident in VMEM.
    b*_ref: replicated biases (f32, (1, n)), resident in VMEM.
    o_ref : (tile_rows, 16)  -- one sigmoid output per packed batch row.
    """
    x = x_ref[...].astype(jnp.bfloat16)        # MXU operand; no-op if caller supplied bf16

    # Layer 1: (tile_rows, 128) @ (128, 192) -> (tile_rows, 192); f32 accumulate, bias, ReLU.
    h1 = jnp.dot(x, w1_ref[...], preferred_element_type=jnp.float32)
    h1 = jnp.maximum(h1 + b1_ref[...], 0.0)

    # Layer 2: (tile_rows, 192) @ (192, 128) -> (tile_rows, 128).
    h2 = jnp.dot(h1.astype(jnp.bfloat16), w2_ref[...], preferred_element_type=jnp.float32)
    h2 = jnp.maximum(h2 + b2_ref[...], 0.0)

    # Layer 3: (tile_rows, 128) @ (128, 16) -> (tile_rows, 16): one logit per batch row.
    logits = jnp.dot(h2.astype(jnp.bfloat16), w3_ref[...], preferred_element_type=jnp.float32)
    logits = logits + b3_ref[...]

    # Sigmoid: exp + approximate reciprocal, both on the EUP (off the VPU critical path).
    o_ref[...] = pl.reciprocal(1.0 + jnp.exp(-logits), approx=True)


def pack_params(params):
    """Build the packed, MXU-ready parameter set once (bf16 weights, f32 biases)."""
    eye = jnp.eye(PACK, dtype=jnp.float32)
    w1_bd = jnp.kron(eye, params["w1"].T).astype(jnp.bfloat16)           # (128, 192)
    w2_bd = jnp.kron(eye, params["w2"].T).astype(jnp.bfloat16)           # (192, 128)
    w3_bd = jnp.kron(eye, params["w3"].T).astype(jnp.bfloat16)           # (128,  16)
    b1_bd = jnp.tile(params["b1"].astype(jnp.float32), PACK)[None, :]    # (1, 192)
    b2_bd = jnp.tile(params["b2"].astype(jnp.float32), PACK)[None, :]    # (1, 128)
    b3_bd = jnp.tile(params["b3"].astype(jnp.float32), PACK)[None, :]    # (1, 16)
    return w1_bd, b1_bd, w2_bd, b2_bd, w3_bd, b3_bd


def pima_classifier_forward(x, params, *, tile_b=65536):
    """x: (B, 8) float32 (or bfloat16).  params: dict from init_params().  Returns (B, 1) f32."""
    if tile_b <= 0 or tile_b % 128 != 0:
        raise ValueError("tile_b must be a positive multiple of 128")
    B = x.shape[0]
    if x.dtype not in (jnp.float32, jnp.bfloat16):
        x = x.astype(jnp.float32)

    # Tile sizing: never tile past the (128-row padded) batch, and keep >= 2 tiles when
    # the batch allows it so v7x's two TensorCores both get work ("parallel" grid axis).
    b128 = _round_up(B, 128)
    max_tile = _round_up(b128 // 2, 128) if b128 >= 256 else 128
    tile_b = min(tile_b, max_tile)
    grid_b = pl.cdiv(B, tile_b)
    padded_b = grid_b * tile_b
    tile_rows = tile_b // PACK

    if padded_b != B:
        x = jnp.pad(x, ((0, padded_b - B), (0, 0)))          # zero rows, sliced off below
    # Lane-dense packed view: 16 batch rows per VMEM row (free, contiguous reshape).
    x_packed = x.reshape(padded_b // PACK, PACK * IN_F)

    w1_bd, b1_bd, w2_bd, b2_bd, w3_bd, b3_bd = pack_params(params)

    def resident(a):
        # Full-array block, constant block index -> DMA'd once, stays resident in VMEM.
        return pl.BlockSpec(a.shape, lambda i: (0,) * a.ndim)

    param_bytes = sum(int(a.size) * a.dtype.itemsize
                      for a in (w1_bd, b1_bd, w2_bd, b2_bd, w3_bd, b3_bd))
    cost = pl.CostEstimate(
        flops=2 * (padded_b // PACK) * ((PACK * IN_F) * (PACK * H1)
                                        + (PACK * H1) * (PACK * H2)
                                        + (PACK * H2) * PACK),
        transcendentals=2 * padded_b,
        bytes_accessed=int(x_packed.size) * x_packed.dtype.itemsize
                       + padded_b * 4 + param_bytes)

    out_packed = pl.pallas_call(
        _mlp_kernel,
        out_shape=jax.ShapeDtypeStruct((padded_b // PACK, PACK), jnp.float32),
        grid_spec=pltpu.PrefetchScalarGridSpec(
            num_scalar_prefetch=0,
            grid=(grid_b,),
            in_specs=[
                # x stream: lane-dense (tile_rows, 128), default double-buffered.
                pl.BlockSpec((tile_rows, PACK * IN_F), lambda i: (i, 0)),
                resident(w1_bd), resident(b1_bd),
                resident(w2_bd), resident(b2_bd),
                resident(w3_bd), resident(b3_bd),
            ],
            # Packed output block: minor dim equals the full array minor (16) ->
            # contiguous HBM writeback; unpacked to (B, 1) in the wrapper for free.
            out_specs=pl.BlockSpec((tile_rows, PACK), lambda i: (i, 0)),
        ),
        compiler_params=pltpu.CompilerParams(
            dimension_semantics=("parallel",),        # v7x: shard batch tiles over 2 TCs
            vmem_limit_bytes=48 * 1024 * 1024,        # big tiles OK; <= v7x's 64 MiB/TC
        ),
        cost_estimate=cost,
    )(x_packed, w1_bd, b1_bd, w2_bd, b2_bd, w3_bd, b3_bd)

    # Free wrapper-side reshape: (padded_b/16, 16) -> (padded_b, 1) -> (B, 1).
    return out_packed.reshape(padded_b, 1)[:B]


def init_params(key):
    """PyTorch nn.Linear default init: U(-1/sqrt(fan_in), +1/sqrt(fan_in)).

    Layouts match PyTorch: w1 (12,8) b1 (12,), w2 (8,12) b2 (8,), w3 (1,8) b3 (1,).
    """
    def linear(k, fan_in, fan_out):
        kw, kb = jax.random.split(k)
        bound = 1.0 / (fan_in ** 0.5)
        w = jax.random.uniform(kw, (fan_out, fan_in), jnp.float32, -bound, bound)
        b = jax.random.uniform(kb, (fan_out,), jnp.float32, -bound, bound)
        return w, b

    k1, k2, k3 = jax.random.split(key, 3)
    w1, b1 = linear(k1, IN_F, H1)
    w2, b2 = linear(k2, H1, H2)
    w3, b3 = linear(k3, H2, 1)
    return {"w1": w1, "b1": b1, "w2": w2, "b2": b2, "w3": w3, "b3": b3}


if __name__ == "__main__":
    key = jax.random.PRNGKey(0)
    k_params, k_x = jax.random.split(key)

    params = init_params(k_params)
    B = 300                                              # small batch, not a tile multiple
    x = jax.random.normal(k_x, (B, 8), dtype=jnp.float32)

    # tile_b auto-clamps to 256 here -> 2 grid steps: exercises tiling, packing, padding,
    # resident weights, and the packed output unpack.
    out = pima_classifier_forward(x, params)
    out = jax.block_until_ready(out)

    # Plain-JAX f32 reference (same math as PimaClassifier.forward).
    h1 = jnp.maximum(x @ params["w1"].T + params["b1"], 0.0)
    h2 = jnp.maximum(h1 @ params["w2"].T + params["b2"], 0.0)
    ref = jax.nn.sigmoid(h2 @ params["w3"].T + params["b3"])

    assert out.shape == (B, 1), out.shape
    err = float(jnp.max(jnp.abs(out - ref)))
    # bf16 MXU operands + approx-reciprocal sigmoid => small, bounded deviation from f32.
    assert err < 3e-2, f"max abs err {err}"
    print("KERNEL_OK")
</pallas_src>

<mosaic_0001>
module attributes {stable_mosaic.version = 11 : i64} {
  func.func @_mlp_kernel(%arg0: i32, %arg1: memref<16x128xf32, #tpu.memory_space<vmem>>, %arg2: memref<128x192xbf16, #tpu.memory_space<vmem>>, %arg3: memref<1x192xf32, #tpu.memory_space<vmem>>, %arg4: memref<192x128xbf16, #tpu.memory_space<vmem>>, %arg5: memref<1x128xf32, #tpu.memory_space<vmem>>, %arg6: memref<128x16xbf16, #tpu.memory_space<vmem>>, %arg7: memref<1x16xf32, #tpu.memory_space<vmem>>, %arg8: memref<16x16xf32, #tpu.memory_space<vmem>>) attributes {dimension_semantics = [#tpu.dimension_semantics<parallel>], iteration_bounds = array<i64: 2>, scalar_prefetch = 0 : i64, scratch_operands = 0 : i64, tpu.core_type = #tpu.core_type<tc>, window_params = [{transform_indices = @transform_0, window_bounds = array<i64: 16, 128>}, {pipeline_mode = #tpu.pipeline_mode<synchronous>, transform_indices = @transform_1, window_bounds = array<i64: 128, 192>}, {pipeline_mode = #tpu.pipeline_mode<synchronous>, transform_indices = @transform_2, window_bounds = array<i64: 1, 192>}, {pipeline_mode = #tpu.pipeline_mode<synchronous>, transform_indices = @transform_3, window_bounds = array<i64: 192, 128>}, {pipeline_mode = #tpu.pipeline_mode<synchronous>, transform_indices = @transform_4, window_bounds = array<i64: 1, 128>}, {pipeline_mode = #tpu.pipeline_mode<synchronous>, transform_indices = @transform_5, window_bounds = array<i64: 128, 16>}, {pipeline_mode = #tpu.pipeline_mode<synchronous>, transform_indices = @transform_6, window_bounds = array<i64: 1, 16>}, {transform_indices = @transform_7, window_bounds = array<i64: 16, 16>}]} {
    %c0 = arith.constant 0 : index
    %c0_0 = arith.constant 0 : index
    %0 = vector.load %arg1[%c0, %c0_0] : memref<16x128xf32, #tpu.memory_space<vmem>>, vector<16x128xf32>
    %1 = arith.truncf %0 : vector<16x128xf32> to vector<16x128xbf16>
    %c0_1 = arith.constant 0 : index
    %c0_2 = arith.constant 0 : index
    %2 = vector.load %arg2[%c0_1, %c0_2] : memref<128x192xbf16, #tpu.memory_space<vmem>>, vector<128x192xbf16>
    %cst = arith.constant dense<0.000000e+00> : vector<16x192xf32>
    %3 = tpu.matmul %1, %2, %cst {dimension_numbers = #tpu.dot_dimension_numbers<[1], [0], [0], [1], [0, 0, 1, 1], [], []>} : vector<16x128xbf16>, vector<128x192xbf16>, vector<16x192xf32> -> vector<16x192xf32>
    %c0_3 = arith.constant 0 : index
    %c0_4 = arith.constant 0 : index
    %4 = vector.load %arg3[%c0_3, %c0_4] : memref<1x192xf32, #tpu.memory_space<vmem>>, vector<1x192xf32>
    %5 = vector.broadcast %4 : vector<1x192xf32> to vector<16x192xf32>
    %6 = arith.addf %3, %5 : vector<16x192xf32>
    %cst_5 = arith.constant 0.000000e+00 : f32
    %7 = vector.broadcast %cst_5 : f32 to vector<16x192xf32>
    %8 = arith.maximumf %6, %7 : vector<16x192xf32>
    %9 = arith.truncf %8 : vector<16x192xf32> to vector<16x192xbf16>
    %c0_6 = arith.constant 0 : index
    %c0_7 = arith.constant 0 : index
    %10 = vector.load %arg4[%c0_6, %c0_7] : memref<192x128xbf16, #tpu.memory_space<vmem>>, vector<192x128xbf16>
    %cst_8 = arith.constant dense<0.000000e+00> : vector<16x128xf32>
    %11 = tpu.matmul %9, %10, %cst_8 {dimension_numbers = #tpu.dot_dimension_numbers<[1], [0], [0], [1], [0, 0, 1, 1], [], []>} : vector<16x192xbf16>, vector<192x128xbf16>, vector<16x128xf32> -> vector<16x128xf32>
    %c0_9 = arith.constant 0 : index
    %c0_10 = arith.constant 0 : index
    %12 = vector.load %arg5[%c0_9, %c0_10] : memref<1x128xf32, #tpu.memory_space<vmem>>, vector<1x128xf32>
    %13 = vector.broadcast %12 : vector<1x128xf32> to vector<16x128xf32>
    %14 = arith.addf %11, %13 : vector<16x128xf32>
    %cst_11 = arith.constant 0.000000e+00 : f32
    %15 = vector.broadcast %cst_11 : f32 to vector<16x128xf32>
    %16 = arith.maximumf %14, %15 : vector<16x128xf32>
    %17 = arith.truncf %16 : vector<16x128xf32> to vector<16x128xbf16>
    %c0_12 = arith.constant 0 : index
    %c0_13 = arith.constant 0 : index
    %18 = vector.load %arg6[%c0_12, %c0_13] : memref<128x16xbf16, #tpu.memory_space<vmem>>, vector<128x16xbf16>
    %cst_14 = arith.constant dense<0.000000e+00> : vector<16x16xf32>
    %19 = tpu.matmul %17, %18, %cst_14 {dimension_numbers = #tpu.dot_dimension_numbers<[1], [0], [0], [1], [0, 0, 1, 1], [], []>} : vector<16x128xbf16>, vector<128x16xbf16>, vector<16x16xf32> -> vector<16x16xf32>
    %c0_15 = arith.constant 0 : index
    %c0_16 = arith.constant 0 : index
    %20 = vector.load %arg7[%c0_15, %c0_16] : memref<1x16xf32, #tpu.memory_space<vmem>>, vector<1x16xf32>
    %21 = vector.broadcast %20 : vector<1x16xf32> to vector<16x16xf32>
    %22 = arith.addf %19, %21 : vector<16x16xf32>
    %cst_17 = arith.constant 0.000000e+00 : f32
    %23 = vector.broadcast %cst_17 : f32 to vector<16x16xf32>
    %24 = arith.subf %23, %22 : vector<16x16xf32>
    %25 = math.exp %24 : vector<16x16xf32>
    %cst_18 = arith.constant 1.000000e+00 : f32
    %26 = vector.broadcast %cst_18 : f32 to vector<16x16xf32>
    %27 = arith.addf %26, %25 : vector<16x16xf32>
    %28 = tpu.reciprocal %27 {approx = true} : vector<16x16xf32> -> vector<16x16xf32>
    %c0_19 = arith.constant 0 : index
    %c0_20 = arith.constant 0 : index
    %29 = vector.load %arg8[%c0_19, %c0_20] : memref<16x16xf32, #tpu.memory_space<vmem>>, vector<16x16xf32>
    tpu.vector_store %arg8[%c0_19, %c0_20], %28 {strides = array<i32>} : memref<16x16xf32, #tpu.memory_space<vmem>>, vector<16x16xf32>,
    return
  }
  func.func @transform_0(%arg0: i32) -> (i32, i32) {
    %c0_i32 = arith.constant 0 : i32
    %c0_i32_0 = arith.constant 0 : i32
    return %arg0, %c0_i32 : i32, i32
  }
  func.func @transform_1(%arg0: i32) -> (i32, i32) {
    %c0_i32 = arith.constant 0 : i32
    %c0_i32_0 = arith.constant 0 : i32
    %c0_i32_1 = arith.constant 0 : i32
    return %c0_i32, %c0_i32_0 : i32, i32
  }
  func.func @transform_2(%arg0: i32) -> (i32, i32) {
    %c0_i32 = arith.constant 0 : i32
    %c0_i32_0 = arith.constant 0 : i32
    %c0_i32_1 = arith.constant 0 : i32
    return %c0_i32, %c0_i32_0 : i32, i32
  }
  func.func @transform_3(%arg0: i32) -> (i32, i32) {
    %c0_i32 = arith.constant 0 : i32
    %c0_i32_0 = arith.constant 0 : i32
    %c0_i32_1 = arith.constant 0 : i32
    return %c0_i32, %c0_i32_0 : i32, i32
  }
  func.func @transform_4(%arg0: i32) -> (i32, i32) {
    %c0_i32 = arith.constant 0 : i32
    %c0_i32_0 = arith.constant 0 : i32
    %c0_i32_1 = arith.constant 0 : i32
    return %c0_i32, %c0_i32_0 : i32, i32
  }
  func.func @transform_5(%arg0: i32) -> (i32, i32) {
    %c0_i32 = arith.constant 0 : i32
    %c0_i32_0 = arith.constant 0 : i32
    %c0_i32_1 = arith.constant 0 : i32
    return %c0_i32, %c0_i32_0 : i32, i32
  }
  func.func @transform_6(%arg0: i32) -> (i32, i32) {
    %c0_i32 = arith.constant 0 : i32
    %c0_i32_0 = arith.constant 0 : i32
    %c0_i32_1 = arith.constant 0 : i32
    return %c0_i32, %c0_i32_0 : i32, i32
  }
  func.func @transform_7(%arg0: i32) -> (i32, i32) {
    %c0_i32 = arith.constant 0 : i32
    %c0_i32_0 = arith.constant 0 : i32
    return %arg0, %c0_i32 : i32, i32
  }
}

</mosaic_0001>

<llo_original>
// kernel: tpu_custom_call.1
$region0: #{tpu_custom_call.1}
  #allocation0 [shape = 'u32[]', space=smem, size = 0x4, offset = 0x4, fixed_abs, tag = 'smem constant byte address 0x4 - core index']
  #allocation1 [shape = 'u32[144,128]{1,0:T(1,128)}', space=vmem, size = 0x12000, scoped, tag = 'internal scratch']
  %s0 = inlined_call_operand.vmem [shape: f32[32,128], index: 0, kind: input, shape index: {}]
  %s1 = inlined_call_operand.vmem [shape: bf16[128,192], index: 1, kind: input, shape index: {}]
  %s2 = inlined_call_operand.vmem [shape: f32[1,192], index: 2, kind: input, shape index: {}]
  %s3 = inlined_call_operand.vmem [shape: bf16[192,128], index: 3, kind: input, shape index: {}]
  %s4 = inlined_call_operand.vmem [shape: f32[1,128], index: 4, kind: input, shape index: {}]
  %s5 = inlined_call_operand.vmem [shape: bf16[128,16], index: 5, kind: input, shape index: {}]
  %s6 = inlined_call_operand.vmem [shape: f32[1,16], index: 6, kind: input, shape index: {}]
  %s7 = inlined_call_operand.vmem [shape: f32[32,16], index: 7, kind: output, shape index: {}]
  %s8 = sld [smem:[#allocation0]]
  $region61: #{tpu_custom_call.1} parent=0
    _
  %s10 = ssub.s32 1, %s8
  %s11 = scalar_select 0, %s10, %s8
  loop: start=0, step=1, limit=4
  $region2: #{tpu_custom_call.1} parent=0 // loop_pre_header
    _
  $region3: #{tpu_custom_call.1} parent=0 // loop_header
    %s13 = sphi 0, %s17
    %p14 = scmp.ge.s32.totalorder %s13, 4
    %s23 = sphi 0, %s25
    %s26 = sphi 0, %s23
    %s27 = sphi 0, %s26
    %s43 = sphi 0, %s27
    %s47 = sphi 0, %s47
    %s49 = sphi 0, %s47
    %s50 = sphi 0, %s49
    %s64 = sphi 0, %s50
    %s68 = sphi 0, %s68
    %s70 = sphi 0, %s68
    %s71 = sphi 0, %s70
    %s85 = sphi 0, %s71
    %s89 = sphi 0, %s89
    %s91 = sphi 0, %s89
    %s92 = sphi 0, %s91
    %s106 = sphi 0, %s92
    %s110 = sphi 0, %s110
    %s112 = sphi 0, %s110
    %s113 = sphi 0, %s112
    %s127 = sphi 0, %s113
    %s131 = sphi 0, %s131
    %s133 = sphi 0, %s131
    %s134 = sphi 0, %s133
    %s148 = sphi 0, %s134
    %s152 = sphi 0, %s152
    %s154 = sphi 0, %s152
    %s155 = sphi 0, %s154
    %s169 = sphi 0, %s155
    %s175 = sphi 0, %s177
    %s178 = sphi 0, %s175
    %s179 = sphi 0, %s178
    %s195 = sphi 0, %s179
  $region4: #{tpu_custom_call.1} parent=0 // loop_header_branch
    %16 = sbr.rel (%p14) target = $region8
  $region5: #{tpu_custom_call.1} parent=0 // loop_body
    %s18 = ssub.s32 %s13, 1
    %s19 = ssub.s32 %s13, 2
    %s20 = sadd.s32 %s13, 1
    %s21 = ssub.s32 %s13, %s20
    %p22 = scmp.eq.s32.totalorder %s21, 0
    %s24 = sadd.s32 %s23, 1
    %s25 = scalar_select %p22, %s23, %s24
    %p28 = pneg %p22
    %p29 = scmp.eq.s32.totalorder %s13, 1
    %p30 = por %p28, %p29
    %p31 = scmp.ne.s32.totalorder %s23, %s26
    %p32 = scmp.eq.s32.totalorder %s13, 0
    %p33 = por %p31, %p32
    %p34 = scmp.ne.s32.totalorder %s23, %s26
    %p35 = scmp.eq.s32.totalorder %s18, 1
    %p36 = por %p34, %p35
    %p37 = scmp.ne.s32.totalorder %s26, %s27
    %p38 = scmp.eq.s32.totalorder %s18, 0
    %p39 = por %p37, %p38
    %p40 = scmp.ne.s32.totalorder %s26, %s27
    %p41 = scmp.eq.s32.totalorder %s19, 1
    %p42 = por %p40, %p41
    %p44 = scmp.ne.s32.totalorder %s27, %s43
    %p45 = scmp.eq.s32.totalorder %s19, 0
    %p46 = por %p44, %p45
    %s48 = sadd.s32 %s47, 1
    %p51 = scmp.eq.s32.totalorder %s13, 1
    %p52 = scmp.ne.s32.totalorder %s47, %s49
    %p53 = scmp.eq.s32.totalorder %s13, 0
    %p54 = por %p52, %p53
    %p55 = scmp.ne.s32.totalorder %s47, %s49
    %p56 = scmp.eq.s32.totalorder %s18, 1
    %p57 = por %p55, %p56
    %p58 = scmp.ne.s32.totalorder %s49, %s50
    %p59 = scmp.eq.s32.totalorder %s18, 0
    %p60 = por %p58, %p59
    %p61 = scmp.ne.s32.totalorder %s49, %s50
    %p62 = scmp.eq.s32.totalorder %s19, 1
    %p63 = por %p61, %p62
    %p65 = scmp.ne.s32.totalorder %s50, %s64
    %p66 = scmp.eq.s32.totalorder %s19, 0
    %p67 = por %p65, %p66
    %s69 = sadd.s32 %s68, 1
    %p72 = scmp.eq.s32.totalorder %s13, 1
    %p73 = scmp.ne.s32.totalorder %s68, %s70
    %p74 = scmp.eq.s32.totalorder %s13, 0
    %p75 = por %p73, %p74
    %p76 = scmp.ne.s32.totalorder %s68, %s70
    %p77 = scmp.eq.s32.totalorder %s18, 1
    %p78 = por %p76, %p77
    %p79 = scmp.ne.s32.totalorder %s70, %s71
    %p80 = scmp.eq.s32.totalorder %s18, 0
    %p81 = por %p79, %p80
    %p82 = scmp.ne.s32.totalorder %s70, %s71
    %p83 = scmp.eq.s32.totalorder %s19, 1
    %p84 = por %p82, %p83
    %p86 = scmp.ne.s32.totalorder %s71, %s85
    %p87 = scmp.eq.s32.totalorder %s19, 0
    %p88 = por %p86, %p87
    %s90 = sadd.s32 %s89, 1
    %p93 = scmp.eq.s32.totalorder %s13, 1
    %p94 = scmp.ne.s32.totalorder %s89, %s91
    %p95 = scmp.eq.s32.totalorder %s13, 0
    %p96 = por %p94, %p95
    %p97 = scmp.ne.s32.totalorder %s89, %s91
    %p98 = scmp.eq.s32.totalorder %s18, 1
    %p99 = por %p97, %p98
    %p100 = scmp.ne.s32.totalorder %s91, %s92
    %p101 = scmp.eq.s32.totalorder %s18, 0
    %p102 = por %p100, %p101
    %p103 = scmp.ne.s32.totalorder %s91, %s92
    %p104 = scmp.eq.s32.totalorder %s19, 1
    %p105 = por %p103, %p104
    %p107 = scmp.ne.s32.totalorder %s92, %s106
    %p108 = scmp.eq.s32.totalorder %s19, 0
    %p109 = por %p107, %p108
    %s111 = sadd.s32 %s110, 1
    %p114 = scmp.eq.s32.totalorder %s13, 1
    %p115 = scmp.ne.s32.totalorder %s110, %s112
    %p116 = scmp.eq.s32.totalorder %s13, 0
    %p117 = por %p115, %p116
    %p118 = scmp.ne.s32.totalorder %s110, %s112
    %p119 = scmp.eq.s32.totalorder %s18, 1
    %p120 = por %p118, %p119
    %p121 = scmp.ne.s32.totalorder %s112, %s113
    %p122 = scmp.eq.s32.totalorder %s18, 0
    %p123 = por %p121, %p122
    %p124 = scmp.ne.s32.totalorder %s112, %s113
    %p125 = scmp.eq.s32.totalorder %s19, 1
    %p126 = por %p124, %p125
    %p128 = scmp.ne.s32.totalorder %s113, %s127
    %p129 = scmp.eq.s32.totalorder %s19, 0
    %p130 = por %p128, %p129
    %s132 = sadd.s32 %s131, 1
    %p135 = scmp.eq.s32.totalorder %s13, 1
    %p136 = scmp.ne.s32.totalorder %s131, %s133
    %p137 = scmp.eq.s32.totalorder %s13, 0
    %p138 = por %p136, %p137
    %p139 = scmp.ne.s32.totalorder %s131, %s133
    %p140 = scmp.eq.s32.totalorder %s18, 1
    %p141 = por %p139, %p140
    %p142 = scmp.ne.s32.totalorder %s133, %s134
    %p143 = scmp.eq.s32.totalorder %s18, 0
    %p144 = por %p142, %p143
    %p145 = scmp.ne.s32.totalorder %s133, %s134
    %p146 = scmp.eq.s32.totalorder %s19, 1
    %p147 = por %p145, %p146
    %p149 = scmp.ne.s32.totalorder %s134, %s148
    %p150 = scmp.eq.s32.totalorder %s19, 0
    %p151 = por %p149, %p150
    %s153 = sadd.s32 %s152, 1
    %p156 = scmp.eq.s32.totalorder %s13, 1
    %p157 = scmp.ne.s32.totalorder %s152, %s154
    %p158 = scmp.eq.s32.totalorder %s13, 0
    %p159 = por %p157, %p158
    %p160 = scmp.ne.s32.totalorder %s152, %s154
    %p161 = scmp.eq.s32.totalorder %s18, 1
    %p162 = por %p160, %p161
    %p163 = scmp.ne.s32.totalorder %s154, %s155
    %p164 = scmp.eq.s32.totalorder %s18, 0
    %p165 = por %p163, %p164
    %p166 = scmp.ne.s32.totalorder %s154, %s155
    %p167 = scmp.eq.s32.totalorder %s19, 1
    %p168 = por %p166, %p167
    %p170 = scmp.ne.s32.totalorder %s155, %s169
    %p171 = scmp.eq.s32.totalorder %s19, 0
    %p172 = por %p170, %p171
    %s173 = ssub.s32 %s13, %s20
    %p174 = scmp.eq.s32.totalorder %s173, 0
    %s176 = sadd.s32 %s175, 1
    %s177 = scalar_select %p174, %s175, %s176
    %p180 = pneg %p174
    %p181 = scmp.eq.s32.totalorder %s13, 1
    %p182 = por %p180, %p181
    %p183 = scmp.ne.s32.totalorder %s175, %s178
    %p184 = scmp.eq.s32.totalorder %s13, 0
    %p185 = por %p183, %p184
    %p186 = scmp.ne.s32.totalorder %s175, %s178
    %p187 = scmp.eq.s32.totalorder %s18, 1
    %p188 = por %p186, %p187
    %p189 = scmp.ne.s32.totalorder %s178, %s179
    %p190 = scmp.eq.s32.totalorder %s18, 0
    %p191 = por %p189, %p190
    %p192 = scmp.ne.s32.totalorder %s178, %s179
    %p193 = scmp.eq.s32.totalorder %s19, 1
    %p194 = por %p192, %p193
    %p196 = scmp.ne.s32.totalorder %s179, %s195
    %p197 = scmp.eq.s32.totalorder %s19, 0
    %p198 = por %p196, %p197
    %p199 = scmp.le.s32.totalorder 1, %s13
    %p200 = scmp.lt.s32.totalorder %s13, 3
    %p201 = pnand %p199, %p200
    %p202 = pneg %p201
    // Predicated region
    $region9: #{tpu_custom_call.1} parent=5 // pred_check
      _
    $region10: #{tpu_custom_call.1} parent=5 // pred_check_branch
      %204 = sbr.rel (%p201) target = $region12
    $region11: #{tpu_custom_call.1} parent=5 // pred_region
      %s205 = ssub.s32 %s13, 1
      // Predicated region
      $region13: #{tpu_custom_call.1} parent=11 // pred_check
        %p206 = pneg %p60
      $region14: #{tpu_custom_call.1} parent=11 // pred_check_branch
        %208 = sbr.rel (%p206) target = $region16
      $region15: #{tpu_custom_call.1} parent=11 // pred_region
        _
      $region16: #{tpu_custom_call.1} parent=11 // pred_fallthru
        _
      // Predicated region
      $region17: #{tpu_custom_call.1} parent=11 // pred_check
        %p209 = pneg %p81
      $region18: #{tpu_custom_call.1} parent=11 // pred_check_branch
        %211 = sbr.rel (%p209) target = $region20
      $region19: #{tpu_custom_call.1} parent=11 // pred_region
        _
      $region20: #{tpu_custom_call.1} parent=11 // pred_fallthru
        _
      // Predicated region
      $region21: #{tpu_custom_call.1} parent=11 // pred_check
        %p212 = pneg %p102
      $region22: #{tpu_custom_call.1} parent=11 // pred_check_branch
        %214 = sbr.rel (%p212) target = $region24
      $region23: #{tpu_custom_call.1} parent=11 // pred_region
        _
      $region24: #{tpu_custom_call.1} parent=11 // pred_fallthru
        _
      // Predicated region
      $region25: #{tpu_custom_call.1} parent=11 // pred_check
        %p215 = pneg %p123
      $region26: #{tpu_custom_call.1} parent=11 // pred_check_branch
        %217 = sbr.rel (%p215) target = $region28
      $region27: #{tpu_custom_call.1} parent=11 // pred_region
        _
      $region28: #{tpu_custom_call.1} parent=11 // pred_fallthru
        _
      // Predicated region
      $region29: #{tpu_custom_call.1} parent=11 // pred_check
        %p218 = pneg %p144
      $region30: #{tpu_custom_call.1} parent=11 // pred_check_branch
        %220 = sbr.rel (%p218) target = $region32
      $region31: #{tpu_custom_call.1} parent=11 // pred_region
        _
      $region32: #{tpu_custom_call.1} parent=11 // pred_fallthru
        _
      // Predicated region
      $region33: #{tpu_custom_call.1} parent=11 // pred_check
        %p221 = pneg %p165
      $region34: #{tpu_custom_call.1} parent=11 // pred_check_branch
        %223 = sbr.rel (%p221) target = $region36
      $region35: #{tpu_custom_call.1} parent=11 // pred_region
        _
      $region36: #{tpu_custom_call.1} parent=11 // pred_fallthru
        _
    $region12: #{tpu_custom_call.1} parent=5 // pred_fallthru
      _
    %p224 = scmp.lt.s32.totalorder %s13, 2
    // Predicated region
    $region37: #{tpu_custom_call.1} parent=5 // pred_check
      %p225 = pneg %p224
    $region38: #{tpu_custom_call.1} parent=5 // pred_check_branch
      %227 = sbr.rel (%p225) target = $region40
    $region39: #{tpu_custom_call.1} parent=5 // pred_region
      // Predicated region
      $region41: #{tpu_custom_call.1} parent=39 // pred_check
        %p228 = pneg %p33
      $region42: #{tpu_custom_call.1} parent=39 // pred_check_branch
        %230 = sbr.rel (%p228) target = $region44
      $region43: #{tpu_custom_call.1} parent=39 // pred_region
        %s231 = smul.u32 2, %s13
        %p232 = scmp.lt.s32.totalorder %s231, 3
        %s233 = scalar_select %p232, %s231, 3
        %s234 = smul.addr %s233, 8
        %s235 = scalar_lea.vmem %s0, %s234
        %s236 = smul.u32 2, %s13
      $region44: #{tpu_custom_call.1} parent=39 // pred_fallthru
        _
    $region40: #{tpu_custom_call.1} parent=5 // pred_fallthru
      _
    %p237 = scmp.le.s32.totalorder 1, %s13
    %p238 = scmp.lt.s32.totalorder %s13, 3
    %p239 = pnand %p237, %p238
    %p240 = pneg %p239
    // Predicated region
    $region45: #{tpu_custom_call.1} parent=5 // pred_check
      _
    $region46: #{tpu_custom_call.1} parent=5 // pred_check_branch
      %242 = sbr.rel (%p239) target = $region48
    $region47: #{tpu_custom_call.1} parent=5 // pred_region
      %s243 = ssub.s32 %s13, 1
      %s244 = smul.u32 2, %s18
      %p245 = scmp.lt.s32.totalorder %s244, 3
      %s246 = scalar_select %p245, %s244, 3
      %s247 = smul.addr %s246, 8
      %s248 = scalar_lea.vmem %s0, %s247
      %p249 = pneg %p39
      %p250 = pneg %p36
      %p251 = pneg %p60
      %p252 = pneg %p57
      %p253 = pneg %p81
      %p254 = pneg %p78
      %p255 = pneg %p102
      %p256 = pneg %p99
      %p257 = pneg %p123
      %p258 = pneg %p120
      %p259 = pneg %p144
      %p260 = pneg %p141
      %p261 = pneg %p165
      %p262 = pneg %p162
      %p263 = pneg %p191
      %p264 = pneg %p188
      %s265 = smul.u32 2, %s18
      %p266 = scmp.lt.s32.totalorder %s265, 3
      %s267 = scalar_select %p266, %s265, 3
      %s268 = smul.addr %s267, 8
      %s269 = scalar_lea.vmem %s7, %s268
      %s270 = smul.u32 2, %s18
      %p271 = scmp.lt.s32.totalorder %s270, 3
      %s272 = scalar_select %p271, %s270, 3
      %s273 = smul.addr %s272, 8
      %s274 = scalar_lea.vmem %s0, %s273
      %s275 = smul.u32 2, %s18
      %s276 = smul.u32 2, %s18
      %p277 = scmp.lt.s32.totalorder %s276, 3
      %s278 = scalar_select %p277, %s276, 3
      %s279 = smul.addr %s278, 8
      %s280 = scalar_lea.vmem %s7, %s279
      %s281 = smul.u32 2, %s18
      %v283 = vld [vmem:[%s274] sm:$0xff]
      %v284 = vld [vmem:[%s274 + $0x8] sm:$0xff]
      %v285 = vpack.c.bf16 %v284, %v283
      %v286 = vld [vmem:[%s1] sm:$0xff]
      %v287 = vld [vmem:[%s1 + $0x8] sm:$0xff]
      %v288 = vld [vmem:[%s1 + $0x10] sm:$0xff]
      %v289 = vld [vmem:[%s1 + $0x18] sm:$0xff]
      %v290 = vld [vmem:[%s1 + $0x20] sm:$0xff]
      %v291 = vld [vmem:[%s1 + $0x28] sm:$0xff]
      %v292 = vld [vmem:[%s1 + $0x30] sm:$0xff]
      %v293 = vld [vmem:[%s1 + $0x38] sm:$0xff]
      %v294 = vld [vmem:[%s1 + $0x40] sm:$0xff]
      %v295 = vld [vmem:[%s1 + $0x48] sm:$0xff]
      %v296 = vld [vmem:[%s1 + $0x50] sm:$0xff]
      %v297 = vld [vmem:[%s1 + $0x58] sm:$0xff]
      %v298 = vld [vmem:[%s1 + $0x60] sm:$0xff]
      %v299 = vld [vmem:[%s1 + $0x68] sm:$0xff]
      %v300 = vld [vmem:[%s1 + $0x70] sm:$0xff]
      %v301 = vld [vmem:[%s1 + $0x78] sm:$0xff]
      %v302 = vld [vmem:[%s2] sm:$0x3]
      %v304 = vlaneseq
      %v305 = vshrl.u32 %v304, 7
      %v306 = vsub.s32 0, %v305
      %v307 = vrot.slane %v302, %v306
      %v308 = vlaneseq
      %v309 = vshrl.u32 %v308, 7
      %v310 = vsub.s32 1, %v309
      %v311 = vrot.slane %v302, %v310
      %v330 = vunpack.c.l.b16 %v286
      %v331 = vunpack.c.h.b16 %v286
      %v332 = vunpack.c.l.b16 %v287
      %v333 = vunpack.c.h.b16 %v287
      %v334 = vunpack.c.l.b16 %v288
      %v335 = vunpack.c.h.b16 %v288
      %v336 = vunpack.c.l.b16 %v289
      %v337 = vunpack.c.h.b16 %v289
      %v338 = vunpack.c.l.b16 %v290
      %v339 = vunpack.c.h.b16 %v290
      %v340 = vunpack.c.l.b16 %v291
      %v341 = vunpack.c.h.b16 %v291
      %v342 = vunpack.c.l.b16 %v292
      %v343 = vunpack.c.h.b16 %v292
      %v344 = vunpack.c.l.b16 %v293
      %v345 = vunpack.c.h.b16 %v293
      %v346 = vunpack.c.l.b16 %v294
      %v347 = vunpack.c.h.b16 %v294
      %v348 = vunpack.c.l.b16 %v295
      %v349 = vunpack.c.h.b16 %v295
      %v350 = vunpack.c.l.b16 %v296
      %v351 = vunpack.c.h.b16 %v296
      %v352 = vunpack.c.l.b16 %v297
      %v353 = vunpack.c.h.b16 %v297
      %v354 = vunpack.c.l.b16 %v298
      %v355 = vunpack.c.h.b16 %v298
      %v356 = vunpack.c.l.b16 %v299
      %v357 = vunpack.c.h.b16 %v299
      %v358 = vunpack.c.l.b16 %v300
      %v359 = vunpack.c.h.b16 %v300
      %v360 = vunpack.c.l.b16 %v301
      %v361 = vunpack.c.h.b16 %v301
      %v362 = vpack.c.b16 %v332, %v330
      %v363 = vpack.c.b16 %v333, %v331
      %v364 = vpack.c.b16 %v336, %v334
      %v365 = vpack.c.b16 %v337, %v335
      %v366 = vpack.c.b16 %v340, %v338
      %v367 = vpack.c.b16 %v341, %v339
      %v368 = vpack.c.b16 %v344, %v342
      %v369 = vpack.c.b16 %v345, %v343
      %v370 = vpack.c.b16 %v348, %v346
      %v371 = vpack.c.b16 %v349, %v347
      %v372 = vpack.c.b16 %v352, %v350
      %v373 = vpack.c.b16 %v353, %v351
      %v374 = vpack.c.b16 %v356, %v354
      %v375 = vpack.c.b16 %v357, %v355
      %v376 = vpack.c.b16 %v360, %v358
      %v377 = vpack.c.b16 %v361, %v359
      %394 = vmatprep.subr.bf16.mxu0 %v363
      %395 = vmatpush1.bf16.msra.mxu0 %v362
      %396 = vmatprep.subr.bf16.mxu0 %v365
      %397 = vmatpush1.bf16.msra.mxu0 %v364
      %398 = vmatprep.subr.bf16.mxu0 %v367
      %399 = vmatpush1.bf16.msra.mxu0 %v366
      %400 = vmatprep.subr.bf16.mxu0 %v369
      %401 = vmatpush1.bf16.msra.mxu0 %v368
      %402 = vmatprep.subr.bf16.mxu0 %v371
      %403 = vmatpush1.bf16.msra.mxu0 %v370
      %404 = vmatprep.subr.bf16.mxu0 %v373
      %405 = vmatpush1.bf16.msra.mxu0 %v372
      %406 = vmatprep.subr.bf16.mxu0 %v375
      %407 = vmatpush1.bf16.msra.mxu0 %v374
      %408 = vmatprep.subr.bf16.mxu0 %v377
      %409 = vmatpush1.bf16.msra.mxu0 %v376
      %410 = vmatprep.subr.bf16.mxu0 0
      %411 = vmatpush1.bf16.msra.mxu0 0
      %412 = vmatprep.subr.bf16.mxu0 0
      %413 = vmatpush1.bf16.msra.mxu0 0
      %414 = vmatprep.subr.bf16.mxu0 0
      %415 = vmatpush1.bf16.msra.mxu0 0
      %416 = vmatprep.subr.bf16.mxu0 0
      %417 = vmatpush1.bf16.msra.mxu0 0
      %418 = vmatprep.subr.bf16.mxu0 0
      %419 = vmatpush1.bf16.msra.mxu0 0
      %420 = vmatprep.subr.bf16.mxu0 0
      %421 = vmatpush1.bf16.msra.mxu0 0
      %422 = vmatprep.subr.bf16.mxu0 0
      %423 = vmatpush1.bf16.msra.mxu0 0
      %424 = vmatprep.subr.bf16.mxu0 0
      %425 = vmatpush1.bf16.msra.mxu0 0
      %426 = vmatprep.mubr.bf16.mxu0 0
      %427 = vmatmul.mubr.bf16.gmra.mrb[0].mxu0 %v285
      %v428 = vpop.f32.mrb[0].mxu0
      %v429 = vadd.f32 %v307, %v428
      %v430 = vpop.f32.mrb[0].mxu0
      %v431 = vadd.f32 %v311, %v430
      %v432 = vpop.f32.mrb[0].mxu0
      %v433 = vadd.f32 %v307, %v432
      %v434 = vpop.f32.mrb[0].mxu0
      %v435 = vadd.f32 %v311, %v434
      %436 = vdwg.mxu0
      %v437 = vmax.f32 %v429, 0.0
      %v438 = vmax.f32 %v431, 0.0
      %v439 = vmax.f32 %v433, 0.0
      %v440 = vmax.f32 %v435, 0.0
      %v441 = vpack.c.bf16 %v439, %v437
      %v442 = vpack.c.bf16 %v440, %v438
      %v443 = vld [vmem:[%s3] sm:$0xf]
      %v444 = vld [vmem:[%s3 + $0x4] sm:$0xf]
      %v445 = vld [vmem:[%s3 + $0x8] sm:$0xf]
      %v446 = vld [vmem:[%s3 + $0xc] sm:$0xf]
      %v447 = vld [vmem:[%s3 + $0x10] sm:$0xf]
      %v448 = vld [vmem:[%s3 + $0x14] sm:$0xf]
      %v449 = vld [vmem:[%s3 + $0x18] sm:$0xf]
      %v450 = vld [vmem:[%s3 + $0x1c] sm:$0xf]
      %v451 = vld [vmem:[%s3 + $0x20] sm:$0xf]
      %v452 = vld [vmem:[%s3 + $0x24] sm:$0xf]
      %v453 = vld [vmem:[%s3 + $0x28] sm:$0xf]
      %v454 = vld [vmem:[%s3 + $0x2c] sm:$0xf]
      %v455 = vld [vmem:[%s3 + $0x30] sm:$0xf]
      %v456 = vld [vmem:[%s3 + $0x34] sm:$0xf]
      %v457 = vld [vmem:[%s3 + $0x38] sm:$0xf]
      %v458 = vld [vmem:[%s3 + $0x3c] sm:$0xf]
      %v459 = vld [vmem:[%s3 + $0x40] sm:$0xf]
      %v460 = vld [vmem:[%s3 + $0x44] sm:$0xf]
      %v461 = vld [vmem:[%s3 + $0x48] sm:$0xf]
      %v462 = vld [vmem:[%s3 + $0x4c] sm:$0xf]
      %v463 = vld [vmem:[%s3 + $0x50] sm:$0xf]
      %v464 = vld [vmem:[%s3 + $0x54] sm:$0xf]
      %v465 = vld [vmem:[%s3 + $0x58] sm:$0xf]
      %v466 = vld [vmem:[%s3 + $0x5c] sm:$0xf]
      %v467 = vld [vmem:[%s4] sm:$0x1]
      %v469 = vlaneseq
      %v470 = vshrl.u32 %v469, 7
      %v471 = vsub.s32 0, %v470
      %v472 = vrot.slane %v467, %v471
      %v498 = vunpack.c.l.b16 %v443
      %v499 = vunpack.c.l.b16 %v444
      %v500 = vunpack.c.l.b16 %v445
      %v501 = vunpack.c.l.b16 %v446
      %v502 = vunpack.c.l.b16 %v447
      %v503 = vunpack.c.l.b16 %v448
      %v504 = vunpack.c.l.b16 %v449
      %v505 = vunpack.c.l.b16 %v450
      %v506 = vunpack.c.l.b16 %v451
      %v507 = vunpack.c.l.b16 %v452
      %v508 = vunpack.c.l.b16 %v453
      %v509 = vunpack.c.l.b16 %v454
      %v510 = vunpack.c.l.b16 %v455
      %v511 = vunpack.c.l.b16 %v456
      %v512 = vunpack.c.l.b16 %v457
      %v513 = vunpack.c.l.b16 %v458
      %v514 = vunpack.c.l.b16 %v459
      %v515 = vunpack.c.l.b16 %v460
      %v516 = vunpack.c.l.b16 %v461
      %v517 = vunpack.c.l.b16 %v462
      %v518 = vunpack.c.l.b16 %v463
      %v519 = vunpack.c.l.b16 %v464
      %v520 = vunpack.c.l.b16 %v465
      %v521 = vunpack.c.l.b16 %v466
      %v522 = vpack.c.b16 %v499, %v498
      %v523 = vpack.c.b16 %v501, %v500
      %v524 = vpack.c.b16 %v503, %v502
      %v525 = vpack.c.b16 %v505, %v504
      %v526 = vpack.c.b16 %v507, %v506
      %v527 = vpack.c.b16 %v509, %v508
      %v528 = vpack.c.b16 %v511, %v510
      %v529 = vpack.c.b16 %v513, %v512
      %v530 = vpack.c.b16 %v515, %v514
      %v531 = vpack.c.b16 %v517, %v516
      %v532 = vpack.c.b16 %v519, %v518
      %v533 = vpack.c.b16 %v521, %v520
      %vm546 = vcmask 523264
      %v548 = vsel %vm546, %v442, 0
      %550 = vmatprep.subr.bf16.mxu0 0
      %551 = vmatpush1.bf16.msra.mxu0 %v522
      %552 = vmatprep.subr.bf16.mxu0 0
      %553 = vmatpush1.bf16.msra.mxu0 %v523
      %554 = vmatprep.subr.bf16.mxu0 0
      %555 = vmatpush1.bf16.msra.mxu0 %v524
      %556 = vmatprep.subr.bf16.mxu0 0
      %557 = vmatpush1.bf16.msra.mxu0 %v525
      %558 = vmatprep.subr.bf16.mxu0 0
      %559 = vmatpush1.bf16.msra.mxu0 %v526
      %560 = vmatprep.subr.bf16.mxu0 0
      %561 = vmatpush1.bf16.msra.mxu0 %v527
      %562 = vmatprep.subr.bf16.mxu0 0
      %563 = vmatpush1.bf16.msra.mxu0 %v528
      %564 = vmatprep.subr.bf16.mxu0 0
      %565 = vmatpush1.bf16.msra.mxu0 %v529
      %566 = vmatprep.subr.bf16.mxu0 0
      %567 = vmatpush1.bf16.msra.mxu0 %v530
      %568 = vmatprep.subr.bf16.mxu0 0
      %569 = vmatpush1.bf16.msra.mxu0 %v531
      %570 = vmatprep.subr.bf16.mxu0 0
      %571 = vmatpush1.bf16.msra.mxu0 %v532
      %572 = vmatprep.subr.bf16.mxu0 0
      %573 = vmatpush1.bf16.msra.mxu0 %v533
      %574 = vmatprep.subr.bf16.mxu0 0
      %575 = vmatpush1.bf16.msra.mxu0 0
      %576 = vmatprep.subr.bf16.mxu0 0
      %577 = vmatpush1.bf16.msra.mxu0 0
      %578 = vmatprep.subr.bf16.mxu0 0
      %579 = vmatpush1.bf16.msra.mxu0 0
      %580 = vmatprep.subr.bf16.mxu0 0
      %581 = vmatpush1.bf16.msra.mxu0 0
      %582 = vmatprep.mubr.bf16.mxu0 %v548
      %583 = vmatmul.mubr.bf16.gmra.mrb[0].mxu0 %v441
      %v584 = vpop.f32.mrb[0].mxu0
      %v585 = vadd.f32 %v472, %v584
      %v586 = vpop.f32.mrb[0].mxu0
      %v587 = vpop.f32.mrb[0].mxu0
      %v588 = vadd.f32 %v472, %v587
      %v589 = vpop.f32.mrb[0].mxu0
      %590 = vdwg.mxu0
      %v591 = vmax.f32 %v585, 0.0
      %v592 = vmax.f32 %v588, 0.0
      %v593 = vpack.c.bf16 %v592, %v591
      %v594 = vld [vmem:[%s5] sm:$0xf]
      %v595 = vld [vmem:[%s5 + $0x4] sm:$0xf]
      %v596 = vld [vmem:[%s5 + $0x8] sm:$0xf]
      %v597 = vld [vmem:[%s5 + $0xc] sm:$0xf]
      %v598 = vld [vmem:[%s5 + $0x10] sm:$0xf]
      %v599 = vld [vmem:[%s5 + $0x14] sm:$0xf]
      %v600 = vld [vmem:[%s5 + $0x18] sm:$0xf]
      %v601 = vld [vmem:[%s5 + $0x1c] sm:$0xf]
      %v602 = vld [vmem:[%s5 + $0x20] sm:$0xf]
      %v603 = vld [vmem:[%s5 + $0x24] sm:$0xf]
      %v604 = vld [vmem:[%s5 + $0x28] sm:$0xf]
      %v605 = vld [vmem:[%s5 + $0x2c] sm:$0xf]
      %v606 = vld [vmem:[%s5 + $0x30] sm:$0xf]
      %v607 = vld [vmem:[%s5 + $0x34] sm:$0xf]
      %v608 = vld [vmem:[%s5 + $0x38] sm:$0xf]
      %v609 = vld [vmem:[%s5 + $0x3c] sm:$0xf]
      %v610 = vld [vmem:[%s6] sm:$0x1]
      %v612 = vlaneseq
      %v613 = vshrl.u32 %v612, 7
      %v614 = vsub.s32 0, %v613
      %v615 = vrot.slane %v610, %v614
      %v633 = vunpack.c.l.b16 %v594
      %v634 = vunpack.c.l.b16 %v595
      %v635 = vunpack.c.l.b16 %v596
      %v636 = vunpack.c.l.b16 %v597
      %v637 = vunpack.c.l.b16 %v598
      %v638 = vunpack.c.l.b16 %v599
      %v639 = vunpack.c.l.b16 %v600
      %v640 = vunpack.c.l.b16 %v601
      %v641 = vunpack.c.l.b16 %v602
      %v642 = vunpack.c.l.b16 %v603
      %v643 = vunpack.c.l.b16 %v604
      %v644 = vunpack.c.l.b16 %v605
      %v645 = vunpack.c.l.b16 %v606
      %v646 = vunpack.c.l.b16 %v607
      %v647 = vunpack.c.l.b16 %v608
      %v648 = vunpack.c.l.b16 %v609
      %v649 = vpack.c.b16 %v634, %v633
      %v650 = vpack.c.b16 %v636, %v635
      %v651 = vpack.c.b16 %v638, %v637
      %v652 = vpack.c.b16 %v640, %v639
      %v653 = vpack.c.b16 %v642, %v641
      %v654 = vpack.c.b16 %v644, %v643
      %v655 = vpack.c.b16 %v646, %v645
      %v656 = vpack.c.b16 %v648, %v647
      %665 = vmatprep.subr.bf16.mxu0 0
      %666 = vmatpush1.bf16.msra.mxu0 %v649
      %667 = vmatprep.subr.bf16.mxu0 0
      %668 = vmatpush1.bf16.msra.mxu0 %v650
      %669 = vmatprep.subr.bf16.mxu0 0
      %670 = vmatpush1.bf16.msra.mxu0 %v651
      %671 = vmatprep.subr.bf16.mxu0 0
      %672 = vmatpush1.bf16.msra.mxu0 %v652
      %673 = vmatprep.subr.bf16.mxu0 0
      %674 = vmatpush1.bf16.msra.mxu0 %v653
      %675 = vmatprep.subr.bf16.mxu0 0
      %676 = vmatpush1.bf16.msra.mxu0 %v654
      %677 = vmatprep.subr.bf16.mxu0 0
      %678 = vmatpush1.bf16.msra.mxu0 %v655
      %679 = vmatprep.subr.bf16.mxu0 0
      %680 = vmatpush1.bf16.msra.mxu0 %v656
      %681 = vmatprep.subr.bf16.mxu0 0
      %682 = vmatpush1.bf16.msra.mxu0 0
      %683 = vmatprep.subr.bf16.mxu0 0
      %684 = vmatpush1.bf16.msra.mxu0 0
      %685 = vmatprep.subr.bf16.mxu0 0
      %686 = vmatpush1.bf16.msra.mxu0 0
      %687 = vmatprep.subr.bf16.mxu0 0
      %688 = vmatpush1.bf16.msra.mxu0 0
      %689 = vmatprep.subr.bf16.mxu0 0
      %690 = vmatpush1.bf16.msra.mxu0 0
      %691 = vmatprep.subr.bf16.mxu0 0
      %692 = vmatpush1.bf16.msra.mxu0 0
      %693 = vmatprep.subr.bf16.mxu0 0
      %694 = vmatpush1.bf16.msra.mxu0 0
      %695 = vmatprep.subr.bf16.mxu0 0
      %696 = vmatpush1.bf16.msra.mxu0 0
      %697 = vmatprep.mubr.bf16.mxu0 0
      %698 = vmatmul.mubr.bf16.gmra.mrb[0].mxu0 %v593
      %v699 = vpop.f32.mrb[0].mxu0
      %v700 = vadd.f32 %v615, %v699
      %v701 = vpop.f32.mrb[0].mxu0
      %v702 = vpop.f32.mrb[0].mxu0
      %v703 = vadd.f32 %v615, %v702
      %v704 = vpop.f32.mrb[0].mxu0
      %705 = vdwg.mxu0
      %v706 = vsub.f32 0.0, %v700
      %v707 = vsub.f32 0.0, %v703
      %v708 = vmul.f32 %v706, 1.442695
      %v709 = vpow.pop %v708
      %v710 = vmul.f32 %v707, 1.442695
      %v711 = vpow.pop %v710
      %v712 = vadd.f32 %v709, 1.0
      %v713 = vadd.f32 %v711, 1.0
      %v714 = vrcp.pop %v712
      %v715 = vrcp.pop %v713
      %vm716 = vcmask 130048
      %717 = vst.msk [vmem:[%s280] sm:$0xff] %vm716, %v714
      %718 = vst.msk [vmem:[%s280 + $0x8] sm:$0xff] %vm716, %v715
      %s719 = smul.u32 2, %s18
      %p720 = scmp.lt.s32.totalorder %s719, 3
      %s721 = scalar_select %p720, %s719, 3
      %s722 = smul.addr %s721, 8
      %s723 = scalar_lea.vmem %s7, %s722
      // Predicated region
      $region49: #{tpu_custom_call.1} parent=47 // pred_check
        %p724 = pneg %p188
      $region50: #{tpu_custom_call.1} parent=47 // pred_check_branch
        %726 = sbr.rel (%p724) target = $region52
      $region51: #{tpu_custom_call.1} parent=47 // pred_region
        %s727 = smul.u32 2, %s18
      $region52: #{tpu_custom_call.1} parent=47 // pred_fallthru
        _
    $region48: #{tpu_custom_call.1} parent=5 // pred_fallthru
      _
    %p728 = scmp.le.s32.totalorder 2, %s13
    // Predicated region
    $region53: #{tpu_custom_call.1} parent=5 // pred_check
      %p729 = pneg %p728
    $region54: #{tpu_custom_call.1} parent=5 // pred_check_branch
      %731 = sbr.rel (%p729) target = $region56
    $region55: #{tpu_custom_call.1} parent=5 // pred_region
      %s732 = ssub.s32 %s13, 2
      // Predicated region
      $region57: #{tpu_custom_call.1} parent=55 // pred_check
        %p733 = pneg %p194
      $region58: #{tpu_custom_call.1} parent=55 // pred_check_branch
        %735 = sbr.rel (%p733) target = $region60
      $region59: #{tpu_custom_call.1} parent=55 // pred_region
        %s736 = smul.u32 2, %s19
        %p737 = scmp.lt.s32.totalorder %s736, 3
        %s738 = scalar_select %p737, %s736, 3
        %s739 = smul.addr %s738, 8
        %s740 = scalar_lea.vmem %s7, %s739
      $region60: #{tpu_custom_call.1} parent=55 // pred_fallthru
        _
    $region56: #{tpu_custom_call.1} parent=5 // pred_fallthru
      _
  $region6: #{tpu_custom_call.1} parent=0 // loop_footer
    %s17 = sadd.s32 1, %s13
  $region7: #{tpu_custom_call.1} parent=0 // loop_footer_branch
    %12 = sbr.rel target = $region3
  $region8: #{tpu_custom_call.1} parent=0 // loop_exit
    _

</llo_original>
